<compile_context>
chip_gen: v5e
topology: v5e:2x2
jax: 0.10.0
libtpu: 0.0.40
codegen_flags: <defaults>
</compile_context>

<pallas_src>
import functools
import math

import jax
import jax.numpy as jnp
from jax.experimental import pallas as pl
from jax.experimental.pallas import tpu as pltpu


_TARGET_BLOCK_BYTES = 4 * 1024 * 1024      # per-stream block size target
_VMEM_LIMIT_BYTES = 48 * 1024 * 1024       # > v5e 16 MiB default, < v7x 64 MiB phys


def _build_pe_table(d_model: int, seq_len: int) -> jnp.ndarray:
    """Reproduce the PyTorch loop exactly:
         pe[pos, i]   = sin(pos / 10000 ** (2 * i       / d_model))
         pe[pos, i+1] = cos(pos / 10000 ** (2 * (i + 1) / d_model))
       (Intentionally keeps the module's quirky cos exponent.)
    """
    pos = jnp.arange(seq_len, dtype=jnp.float32)[:, None]            # (S, 1)
    i_even = jnp.arange(0, d_model, 2, dtype=jnp.float32)[None, :]   # (1, D/2)
    sin_part = jnp.sin(pos / jnp.power(10000.0, 2.0 * i_even / d_model))
    cos_part = jnp.cos(pos / jnp.power(10000.0, 2.0 * (i_even + 1.0) / d_model))
    pe = jnp.stack([sin_part, cos_part], axis=-1).reshape(seq_len, d_model)
    return pe.astype(jnp.float32)


def _pe_add_kernel(x_ref, pe_ref, o_ref, *, scale: float):
    # out = scale * x + pe ; accumulate in f32 (handles bf16 x with f32 pe), then
    # cast to the output dtype.  Pure VPU work; bandwidth-bound.
    x = x_ref[...].astype(jnp.float32)
    pe = pe_ref[...].astype(jnp.float32)
    o_ref[...] = (scale * x + pe).astype(o_ref.dtype)


def _sublane_multiple(itemsize: int) -> int:
    # 8 rows/vreg for 4-byte, 16 for 2-byte, 32 for 1-byte dtypes.
    return max(8, 32 // itemsize)


def positional_encoding_forward(x: jnp.ndarray, pe: jnp.ndarray, d_model: int) -> jnp.ndarray:
    """x: (B, S, D); pe: (S_pe, D) table built at init with S_pe >= S.
       Returns sqrt(d_model) * x + pe[:S] (broadcast over batch)."""
    B, S, D = x.shape
    dtype = x.dtype
    itemsize = jnp.dtype(dtype).itemsize
    pe_itemsize = jnp.dtype(pe.dtype).itemsize
    scale = float(math.sqrt(d_model))
    kernel = functools.partial(_pe_add_kernel, scale=scale)

    if D % 128 == 0:
        # Lane-dense main path: tile the sequence axis, batch as the innermost
        # grid axis (pe block index constant across it -> re-DMA skipped).
        sub = _sublane_multiple(itemsize)
        row_bytes = D * max(itemsize, pe_itemsize)
        rows_target = max(1, _TARGET_BLOCK_BYTES // row_bytes)
        tS = min(S, max(sub, (rows_target // sub) * sub))
        num_s = -(-S // tS)
        if B == 1 and num_s < 2 and S >= 2 * sub:
            # Guarantee >= 2 grid steps so v7x megacore can split across both TCs.
            half = (S + 1) // 2
            tS = ((half + sub - 1) // sub) * sub
            num_s = -(-S // tS)
        grid = (num_s, B)

        cost = pl.CostEstimate(
            flops=2 * B * S * D,
            transcendentals=0,
            # x read + out write + pe read ONCE per seq-block (not per batch).
            bytes_accessed=2 * B * S * D * itemsize + S * D * pe_itemsize,
        )
        return pl.pallas_call(
            kernel,
            out_shape=jax.ShapeDtypeStruct((B, S, D), dtype),
            grid_spec=pltpu.PrefetchScalarGridSpec(
                num_scalar_prefetch=0,
                grid=grid,
                in_specs=[
                    # Squeeze the size-1 batch dim: kernel sees clean (tS, D) tiles.
                    pl.BlockSpec((pl.Squeezed(), tS, D), lambda s, b: (b, s, 0)),
                    # pe block depends only on s -> unchanged across inner b loop.
                    pl.BlockSpec((tS, D), lambda s, b: (s, 0)),
                ],
                out_specs=pl.BlockSpec((pl.Squeezed(), tS, D), lambda s, b: (b, s, 0)),
            ),
            compiler_params=pltpu.CompilerParams(
                dimension_semantics=("parallel", "parallel"),
                vmem_limit_bytes=_VMEM_LIMIT_BYTES,
            ),
            cost_estimate=cost,
        )(x, pe)

    # ---- Fallback: D not a multiple of 128 (e.g. the demo D=32). ----
    # Broadcast pe over batch in the wrapper (cheap at the small/odd shapes that
    # hit this path) and flatten to a lane-dense, sublane-full (rows, 128) slab.
    # TODO(synk): for large odd-D shapes a modular pe index_map (period S*D/128)
    # would avoid materializing the broadcast; not needed at these sizes.
    pe_b = jnp.broadcast_to(pe[:S, :], (B, S, D))
    N = B * S * D
    cost = pl.CostEstimate(
        flops=2 * N,
        transcendentals=0,
        bytes_accessed=2 * N * itemsize + N * pe_itemsize,
    )

    if N % 128 == 0:
        rows = N // 128
        x2 = x.reshape(rows, 128)
        pe2 = pe_b.reshape(rows, 128)
        sub = _sublane_multiple(itemsize)
        row_bytes = 128 * max(itemsize, pe_itemsize)
        rows_target = max(1, _TARGET_BLOCK_BYTES // row_bytes)
        if rows < 8:
            tR = rows  # full-extent sublane dim for tiny shapes
        else:
            tR = min(rows, max(sub, (rows_target // sub) * sub))
        grid = (-(-rows // tR),)
        out2 = pl.pallas_call(
            kernel,
            out_shape=jax.ShapeDtypeStruct((rows, 128), dtype),
            grid_spec=pltpu.PrefetchScalarGridSpec(
                num_scalar_prefetch=0,
                grid=grid,
                in_specs=[
                    pl.BlockSpec((tR, 128), lambda r: (r, 0)),
                    pl.BlockSpec((tR, 128), lambda r: (r, 0)),
                ],
                out_specs=pl.BlockSpec((tR, 128), lambda r: (r, 0)),
            ),
            compiler_params=pltpu.CompilerParams(
                dimension_semantics=("parallel",),
                vmem_limit_bytes=_VMEM_LIMIT_BYTES,
            ),
            cost_estimate=cost,
        )(x2, pe2)
        return out2.reshape(B, S, D)

    # Truly odd total size: single full-extent block (correctness path).
    x2 = x.reshape(1, N)
    pe2 = pe_b.reshape(1, N)
    out2 = pl.pallas_call(
        kernel,
        out_shape=jax.ShapeDtypeStruct((1, N), dtype),
        grid_spec=pltpu.PrefetchScalarGridSpec(
            num_scalar_prefetch=0,
            grid=(1,),
            in_specs=[
                pl.BlockSpec((1, N), lambda i: (0, 0)),
                pl.BlockSpec((1, N), lambda i: (0, 0)),
            ],
            out_specs=pl.BlockSpec((1, N), lambda i: (0, 0)),
        ),
        compiler_params=pltpu.CompilerParams(vmem_limit_bytes=_VMEM_LIMIT_BYTES),
        cost_estimate=cost,
    )(x2, pe2)
    return out2.reshape(B, S, D)


if __name__ == "__main__":
    # Small shapes consistent with the module: batch=2, seq_len=8, d_model=32.
    B, S, D = 2, 8, 32
    d_model, seq_len = D, S

    key = jax.random.PRNGKey(0)
    x = jax.random.normal(key, (B, S, D), dtype=jnp.float32)

    # Deterministic "parameter" (buffer) setup — the PE table from __init__,
    # built ONCE at init (no per-call slice/cast pass).
    pe = _build_pe_table(d_model, seq_len)

    out = positional_encoding_forward(x, pe, d_model)
    out = jax.block_until_ready(out)

    # Sanity check against the pure-JAX reference of the same forward (eval mode).
    ref = math.sqrt(d_model) * x + pe[None, :S, :]
    assert jnp.allclose(out, ref, atol=1e-5, rtol=1e-5), "mismatch vs reference"

    print("KERNEL_OK")
</pallas_src>

<mosaic_0001>
module attributes {stable_mosaic.version = 11 : i64} {
  func.func @_pe_add_kernel(%arg0: i32, %arg1: memref<4x128xf32, #tpu.memory_space<vmem>>, %arg2: memref<4x128xf32, #tpu.memory_space<vmem>>, %arg3: memref<4x128xf32, #tpu.memory_space<vmem>>) attributes {dimension_semantics = [#tpu.dimension_semantics<parallel>], iteration_bounds = array<i64: 1>, scalar_prefetch = 0 : i64, scratch_operands = 0 : i64, tpu.core_type = #tpu.core_type<tc>, window_params = [{transform_indices = @transform_0, window_bounds = array<i64: 4, 128>}, {transform_indices = @transform_1, window_bounds = array<i64: 4, 128>}, {transform_indices = @transform_2, window_bounds = array<i64: 4, 128>}]} {
    %c0 = arith.constant 0 : index
    %c0_0 = arith.constant 0 : index
    %0 = vector.load %arg1[%c0, %c0_0] : memref<4x128xf32, #tpu.memory_space<vmem>>, vector<4x128xf32>
    %c0_1 = arith.constant 0 : index
    %c0_2 = arith.constant 0 : index
    %1 = vector.load %arg2[%c0_1, %c0_2] : memref<4x128xf32, #tpu.memory_space<vmem>>, vector<4x128xf32>
    %cst = arith.constant 5.65685415 : f32
    %2 = vector.broadcast %cst : f32 to vector<4x128xf32>
    %3 = arith.mulf %2, %0 : vector<4x128xf32>
    %4 = arith.addf %3, %1 : vector<4x128xf32>
    %c0_3 = arith.constant 0 : index
    %c0_4 = arith.constant 0 : index
    %5 = vector.load %arg3[%c0_3, %c0_4] : memref<4x128xf32, #tpu.memory_space<vmem>>, vector<4x128xf32>
    tpu.vector_store %arg3[%c0_3, %c0_4], %4 {strides = array<i32>} : memref<4x128xf32, #tpu.memory_space<vmem>>, vector<4x128xf32>,
    return
  }
  func.func @transform_0(%arg0: i32) -> (i32, i32) {
    %c0_i32 = arith.constant 0 : i32
    %c0_i32_0 = arith.constant 0 : i32
    return %arg0, %c0_i32 : i32, i32
  }
  func.func @transform_1(%arg0: i32) -> (i32, i32) {
    %c0_i32 = arith.constant 0 : i32
    %c0_i32_0 = arith.constant 0 : i32
    return %arg0, %c0_i32 : i32, i32
  }
  func.func @transform_2(%arg0: i32) -> (i32, i32) {
    %c0_i32 = arith.constant 0 : i32
    %c0_i32_0 = arith.constant 0 : i32
    return %arg0, %c0_i32 : i32, i32
  }
}

</mosaic_0001>

<llo_original>
// kernel: tpu_custom_call.1
$region0: #{tpu_custom_call.1}
  #allocation0 [shape = 'u32[]', space=smem, size = 0x4, offset = 0x4, fixed_abs, tag = 'smem constant byte address 0x4 - core index']
  #allocation1 [shape = 'u32[72,128]{1,0:T(1,128)}', space=vmem, size = 0x9000, scoped, tag = 'internal scratch']
  %s0 = inlined_call_operand.hbm [shape: f32[4,128], index: 0, kind: input, shape index: {}]
  %s1 = inlined_call_operand.hbm [shape: f32[4,128], index: 1, kind: input, shape index: {}]
  %s2 = inlined_call_operand.hbm [shape: f32[4,128], index: 2, kind: output, shape index: {}]
  %s3 = sld [smem:[#allocation0]]
  $region26: #{tpu_custom_call.1} parent=0
    _
  %s5 = ssub.s32 1, %s3
  %s6 = scalar_select 0, %s5, %s3
  $region1: #{tpu_custom_call.1} parent=0
    #allocation2 [shape = 'u8[2048]{0}', space=vmem, size = 0x800, scoped, tag = 'input window, operand 0, single buffered']
    #allocation3 [shape = 's32[1]{0}', space=sflag, size = 0x4, scoped, tag = 'scoped memory for tpu_custom_call.1']
    #allocation4 [shape = 's32[1]{0}', space=sflag, size = 0x4, scoped, tag = 'scoped memory for tpu_custom_call.1']
    #allocation5 [shape = 'u8[2048]{0}', space=vmem, size = 0x800, scoped, tag = 'input window, operand 1, single buffered']
    #allocation6 [shape = 's32[1]{0}', space=sflag, size = 0x4, scoped, tag = 'scoped memory for tpu_custom_call.1']
    #allocation7 [shape = 'u8[2048]{0}', space=vmem, size = 0x800, scoped, tag = 'output window, operand 0, single buffered']
    %7 = vsyncpa [#allocation3], 0
    %8 = vsyncpa [#allocation6], 0
    %9 = vsyncpa [#allocation4], 0
    // Predicated region
    $region2: #{tpu_custom_call.1} parent=1 // pred_check
      _
    $region3: #{tpu_custom_call.1} parent=1 // pred_check_branch
      %11 = sbr.rel (0) target = $region5
    $region4: #{tpu_custom_call.1} parent=1 // pred_region
      %13 = vsyncadd [#allocation3], 0
      %s15 = sshll.u32 %s0, 4
      %s16 = int_to_ptr.hbm [resolvable:$true] %s15
      %s17 = sshll.u32 [#allocation2], 4
      %s18 = int_to_ptr.vmem [resolvable:$true] %s17
      %20 = dma.hbm_to_vmem [thread:$0]  %s16, 64, %s18, [#allocation3]
    $region5: #{tpu_custom_call.1} parent=1 // pred_fallthru
      _
    // Predicated region
    $region6: #{tpu_custom_call.1} parent=1 // pred_check
      _
    $region7: #{tpu_custom_call.1} parent=1 // pred_check_branch
      %22 = sbr.rel (0) target = $region9
    $region8: #{tpu_custom_call.1} parent=1 // pred_region
      %24 = vsyncadd [#allocation6], 0
      %s26 = sshll.u32 %s1, 4
      %s27 = int_to_ptr.hbm [resolvable:$true] %s26
      %s28 = sshll.u32 [#allocation5], 4
      %s29 = int_to_ptr.vmem [resolvable:$true] %s28
      %31 = dma.hbm_to_vmem [thread:$0]  %s27, 64, %s29, [#allocation6]
    $region9: #{tpu_custom_call.1} parent=1 // pred_fallthru
      _
    // Predicated region
    $region10: #{tpu_custom_call.1} parent=1 // pred_check
      _
    $region11: #{tpu_custom_call.1} parent=1 // pred_check_branch
      %33 = sbr.rel (0) target = $region13
    $region12: #{tpu_custom_call.1} parent=1 // pred_region
      %35 = dma.done [#allocation3], 64
    $region13: #{tpu_custom_call.1} parent=1 // pred_fallthru
      _
    // Predicated region
    $region14: #{tpu_custom_call.1} parent=1 // pred_check
      _
    $region15: #{tpu_custom_call.1} parent=1 // pred_check_branch
      %37 = sbr.rel (0) target = $region17
    $region16: #{tpu_custom_call.1} parent=1 // pred_region
      %39 = dma.done [#allocation6], 64
    $region17: #{tpu_custom_call.1} parent=1 // pred_fallthru
      _
    %v40 = vld [vmem:[#allocation2] sm:$0xf]
    %v41 = vld [vmem:[#allocation5] sm:$0xf]
    %v42 = vmul.f32 %v40, 5.656854
    %v43 = vadd.f32 %v42, %v41
    %44 = vst [vmem:[#allocation7] sm:$0xf] %v43
    // Predicated region
    $region18: #{tpu_custom_call.1} parent=1 // pred_check
      _
    $region19: #{tpu_custom_call.1} parent=1 // pred_check_branch
      %46 = sbr.rel (0) target = $region21
    $region20: #{tpu_custom_call.1} parent=1 // pred_region
      %48 = vsyncadd [#allocation4], 0
      %s50 = sshll.u32 [#allocation7], 4
      %s51 = int_to_ptr.vmem [resolvable:$true] %s50
      %s52 = sshll.u32 %s2, 4
      %s53 = int_to_ptr.hbm [resolvable:$true] %s52
      %55 = dma.vmem_to_hbm [thread:$0]  %s51, 64, %s53, [#allocation4]
    $region21: #{tpu_custom_call.1} parent=1 // pred_fallthru
      _
    // Predicated region
    $region22: #{tpu_custom_call.1} parent=1 // pred_check
      _
    $region23: #{tpu_custom_call.1} parent=1 // pred_check_branch
      %57 = sbr.rel (0) target = $region25
    $region24: #{tpu_custom_call.1} parent=1 // pred_region
      %59 = dma.done [#allocation4], 64
    $region25: #{tpu_custom_call.1} parent=1 // pred_fallthru
      _
    %60 = vsyncpa [#allocation3], 1
    %61 = vsyncpa [#allocation6], 1
    %62 = vsyncpa [#allocation4], 1

</llo_original>
